<compile_context>
chip_gen: v6e
topology: v6e:2x2x1
jax: 0.10.0
libtpu: 0.0.40
codegen_flags: <defaults>
</compile_context>

<pallas_src>
import jax
import jax.numpy as jnp
from jax.experimental import pallas as pl
from jax.experimental.pallas import tpu as pltpu


# ----------------------------- configuration ------------------------------ #
BATCH = 2
FEATURE_SIZES = [16, 8, 4, 2]          # spatial H (=W) of each feature map
NUM_CHANNELS = [16, 32, 64, 128]       # channels of each feature map
INTERM_DIM = 32                        # interm_dim of LossNet
# first=True, last=True  ->  all four branches + 4*interm_dim final linear.

C_TOTAL = sum(NUM_CHANNELS)            # 240
K_PAD = 256                            # packed GAP length (lane-tile aligned)
D_CAT = 4 * INTERM_DIM                 # 128 = width of concatenated branch out
BIAS_LANE = C_TOTAL                    # lane 240 carries the constant 1.0
PAD_LANES = K_PAD - C_TOTAL - 1        # lanes 241..255, always exactly zero
HEAD_W_ROW = 248                       # w_aug row holding wl (final linear)
HEAD_B_ROW = 249                       # w_aug row, col 0 holding bl
# lane-tile aligned packing order: f4 (128) | f3 (64) | f2 (32) | f1 (16) | 1
GAP_ROW_OFF = {4: 0, 3: 128, 2: 192, 1: 224}


# ------------------------------- the kernel ------------------------------- #
def lossnet_kernel(f1_ref, f2_ref, f3_ref, f4_ref, w_ref, out_ref):
    # Global average pools.  f1/f2 arrive channel-first (B, C, H*W): lane-axis
    # mean.  f3/f4 arrive channel-last (B, H*W, C): sublane-axis mean, already
    # lane-dense and (for f4) pre-aligned to the first 128-lane tile.
    g1 = jnp.mean(f1_ref[...], axis=-1)            # (B, 16)
    g2 = jnp.mean(f2_ref[...], axis=-1)            # (B, 32)
    g3 = jnp.mean(f3_ref[...], axis=-2)            # (B, 64)
    g4 = jnp.mean(f4_ref[...], axis=-2)            # (B, 128)

    b = g4.shape[0]
    ones = jnp.ones((b, 1), jnp.float32)           # bias lane (row 240 of w)
    zpad = jnp.zeros((b, PAD_LANES), jnp.float32)  # lanes 241..255 stay zero

    # Packed (B, 256) MXU operand built in vregs: [g4 | g3 | g2 | g1 | 1 | 0].
    gap = jnp.concatenate([g4, g3, g2, g1, ones, zpad], axis=-1)

    # One fused block-diagonal matmul for all four FC branches (+bias), ReLU.
    h = jnp.dot(gap, w_ref[...], preferred_element_type=jnp.float32)  # (B,128)
    h = jnp.maximum(h, 0.0)

    # Final 1-wide linear on the VPU/XLU: the head lives in w_aug's padding
    # rows (one fewer operand / DMA).  Gap lanes 248/249 are zero, so these
    # rows contribute nothing to h above.
    wl = w_ref[HEAD_W_ROW:HEAD_W_ROW + 1, :]       # (1, 128)
    bl = w_ref[HEAD_B_ROW:HEAD_B_ROW + 1, 0:1]     # (1, 1)
    out_ref[...] = jnp.sum(h * wl, axis=-1, keepdims=True) + bl


# ------------------------------ the wrapper ------------------------------- #
def lossnet_forward(features_nchw, w_aug, *, block_b=None):
    """features_nchw: list of 4 NCHW arrays. w_aug: packed (256, 128) weight."""
    B = features_nchw[0].shape[0]

    # f1/f2: free reshape to (B, C, H*W) (lane dim 256 / 64 — already dense).
    f1 = features_nchw[0].reshape(B, NUM_CHANNELS[0], -1)
    f2 = features_nchw[1].reshape(B, NUM_CHANNELS[1], -1)
    # f3/f4: tiny XLA transpose to channel-last (B, H*W, C) so the lane dim is
    # 64/128-dense (contiguous DMA, no lane padding in VMEM).
    f3 = jnp.transpose(features_nchw[2].reshape(B, NUM_CHANNELS[2], -1), (0, 2, 1))
    f4 = jnp.transpose(features_nchw[3].reshape(B, NUM_CHANNELS[3], -1), (0, 2, 1))

    if block_b is None:
        block_b = B if B <= 128 else 128
    grid = (pl.cdiv(B, block_b),)

    def feat_spec(arr):
        s = arr.shape
        return pl.BlockSpec((block_b, s[1], s[2]), lambda i: (i, 0, 0))

    w_spec = pl.BlockSpec((K_PAD, D_CAT), lambda i: (0, 0))   # resident weight
    out_spec = pl.BlockSpec((block_b, 1), lambda i: (i, 0))

    return pl.pallas_call(
        lossnet_kernel,
        out_shape=jax.ShapeDtypeStruct((B, 1), jnp.float32),
        grid=grid,
        in_specs=[feat_spec(f1), feat_spec(f2), feat_spec(f3), feat_spec(f4),
                  w_spec],
        out_specs=out_spec,
        compiler_params=pltpu.CompilerParams(
            dimension_semantics=("parallel",)),
    )(f1, f2, f3, f4, w_aug)


# ------------------------- deterministic parameters ------------------------ #
def make_params(key):
    keys = jax.random.split(key, 10)
    D = INTERM_DIM
    params = {}
    for i, c in enumerate(NUM_CHANNELS):
        bound = 1.0 / jnp.sqrt(c)
        params[f"w{i+1}"] = jax.random.uniform(
            keys[2 * i], (c, D), jnp.float32, -bound, bound)
        params[f"b{i+1}"] = jax.random.uniform(
            keys[2 * i + 1], (1, D), jnp.float32, -bound, bound)
    bound = 1.0 / jnp.sqrt(4 * D)
    params["wl"] = jax.random.uniform(keys[8], (4 * D, 1), jnp.float32, -bound, bound)
    params["bl"] = jax.random.uniform(keys[9], (1, 1), jnp.float32, -bound, bound)
    return params


def pack_params(params):
    """One-time packing: lane-tile-aligned block-diagonal FC weight with a
    fused bias row, plus the final-linear head folded into padding rows."""
    D = INTERM_DIM
    w_aug = jnp.zeros((K_PAD, D_CAT), jnp.float32)
    # Branch i's weight (C_i, D) occupies rows GAP_ROW_OFF[i]..+C_i and output
    # columns (i-1)*D..i*D (column order matches torch.cat([out1..out4])).
    for i, c in enumerate(NUM_CHANNELS, start=1):
        r = GAP_ROW_OFF[i]
        w_aug = w_aug.at[r:r + c, (i - 1) * D:i * D].set(params[f"w{i}"])
    bias_cat = jnp.concatenate(
        [params[f"b{i}"].reshape(-1) for i in range(1, 5)])          # (128,)
    w_aug = w_aug.at[BIAS_LANE, :].set(bias_cat)
    # Fold the head into otherwise-zero padding rows.
    w_aug = w_aug.at[HEAD_W_ROW, :].set(params["wl"].reshape(-1))
    w_aug = w_aug.at[HEAD_B_ROW, 0].set(params["bl"].reshape(()))
    return w_aug


# -------------------------- pure-JAX reference ----------------------------- #
def lossnet_reference(features_nchw, params):
    hs = []
    for i, f in enumerate(features_nchw):
        gap = jnp.mean(f, axis=(2, 3))                               # (B, C)
        h = gap @ params[f"w{i+1}"] + params[f"b{i+1}"]
        hs.append(jnp.maximum(h, 0.0))
    cat = jnp.concatenate(hs, axis=-1)
    return cat @ params["wl"] + params["bl"]


# ----------------------------------- main ---------------------------------- #
if __name__ == "__main__":
    key = jax.random.PRNGKey(0)
    k_feat, k_par = jax.random.split(key)
    feat_keys = jax.random.split(k_feat, 4)

    # PyTorch-convention NCHW inputs.
    features = [
        jax.random.normal(
            feat_keys[i],
            (BATCH, NUM_CHANNELS[i], FEATURE_SIZES[i], FEATURE_SIZES[i]),
            jnp.float32)
        for i in range(4)
    ]
    params = make_params(k_par)
    w_aug = pack_params(params)           # packed once, reused per forward call

    fwd = jax.jit(lossnet_forward)
    out = jax.block_until_ready(fwd(features, w_aug))

    ref = lossnet_reference(features, params)
    assert out.shape == (BATCH, 1), out.shape
    assert jnp.allclose(out, ref, atol=1e-4, rtol=1e-4), (out, ref)

    print("KERNEL_OK")
</pallas_src>

<mosaic_0001>
module attributes {stable_mosaic.version = 11 : i64} {
  func.func @lossnet_kernel(%arg0: i32, %arg1: memref<2x16x256xf32, #tpu.memory_space<vmem>>, %arg2: memref<2x32x64xf32, #tpu.memory_space<vmem>>, %arg3: memref<2x16x64xf32, #tpu.memory_space<vmem>>, %arg4: memref<2x4x128xf32, #tpu.memory_space<vmem>>, %arg5: memref<256x128xf32, #tpu.memory_space<vmem>>, %arg6: memref<2x1xf32, #tpu.memory_space<vmem>>) attributes {dimension_semantics = [#tpu.dimension_semantics<parallel>], iteration_bounds = array<i64: 1>, scalar_prefetch = 0 : i64, scratch_operands = 0 : i64, tpu.core_type = #tpu.core_type<tc>, window_params = [{transform_indices = @transform_0, window_bounds = array<i64: 2, 16, 256>}, {transform_indices = @transform_1, window_bounds = array<i64: 2, 32, 64>}, {transform_indices = @transform_2, window_bounds = array<i64: 2, 16, 64>}, {transform_indices = @transform_3, window_bounds = array<i64: 2, 4, 128>}, {pipeline_mode = #tpu.pipeline_mode<synchronous>, transform_indices = @transform_4, window_bounds = array<i64: 256, 128>}, {transform_indices = @transform_5, window_bounds = array<i64: 2, 1>}]} {
    %c0 = arith.constant 0 : index
    %c0_0 = arith.constant 0 : index
    %c0_1 = arith.constant 0 : index
    %0 = vector.load %arg1[%c0, %c0_0, %c0_1] : memref<2x16x256xf32, #tpu.memory_space<vmem>>, vector<2x16x256xf32>
    %cst = arith.constant dense<0.000000e+00> : vector<2x16xf32>
    %1 = vector.multi_reduction <add>, %0, %cst [2] : vector<2x16x256xf32> to vector<2x16xf32>
    %cst_2 = arith.constant 2.560000e+02 : f32
    %2 = vector.broadcast %cst_2 : f32 to vector<2x16xf32>
    %3 = arith.divf %1, %2 : vector<2x16xf32>
    %c0_3 = arith.constant 0 : index
    %c0_4 = arith.constant 0 : index
    %c0_5 = arith.constant 0 : index
    %4 = vector.load %arg2[%c0_3, %c0_4, %c0_5] : memref<2x32x64xf32, #tpu.memory_space<vmem>>, vector<2x32x64xf32>
    %cst_6 = arith.constant dense<0.000000e+00> : vector<2x32xf32>
    %5 = vector.multi_reduction <add>, %4, %cst_6 [2] : vector<2x32x64xf32> to vector<2x32xf32>
    %cst_7 = arith.constant 6.400000e+01 : f32
    %6 = vector.broadcast %cst_7 : f32 to vector<2x32xf32>
    %7 = arith.divf %5, %6 : vector<2x32xf32>
    %c0_8 = arith.constant 0 : index
    %c0_9 = arith.constant 0 : index
    %c0_10 = arith.constant 0 : index
    %8 = vector.load %arg3[%c0_8, %c0_9, %c0_10] : memref<2x16x64xf32, #tpu.memory_space<vmem>>, vector<2x16x64xf32>
    %cst_11 = arith.constant dense<0.000000e+00> : vector<2x64xf32>
    %9 = vector.multi_reduction <add>, %8, %cst_11 [1] : vector<2x16x64xf32> to vector<2x64xf32>
    %cst_12 = arith.constant 1.600000e+01 : f32
    %10 = vector.broadcast %cst_12 : f32 to vector<2x64xf32>
    %11 = arith.divf %9, %10 : vector<2x64xf32>
    %c0_13 = arith.constant 0 : index
    %c0_14 = arith.constant 0 : index
    %c0_15 = arith.constant 0 : index
    %12 = vector.load %arg4[%c0_13, %c0_14, %c0_15] : memref<2x4x128xf32, #tpu.memory_space<vmem>>, vector<2x4x128xf32>
    %cst_16 = arith.constant dense<0.000000e+00> : vector<2x128xf32>
    %13 = vector.multi_reduction <add>, %12, %cst_16 [1] : vector<2x4x128xf32> to vector<2x128xf32>
    %cst_17 = arith.constant 4.000000e+00 : f32
    %14 = vector.broadcast %cst_17 : f32 to vector<2x128xf32>
    %15 = arith.divf %13, %14 : vector<2x128xf32>
    %cst_18 = arith.constant 1.000000e+00 : f32
    %16 = vector.broadcast %cst_18 : f32 to vector<2x1xf32>
    %cst_19 = arith.constant 0.000000e+00 : f32
    %17 = vector.broadcast %cst_19 : f32 to vector<2x15xf32>
    %18 = tpu.concatenate %15, %11, %7, %3, %16, %17 in 1 : vector<2x128xf32>, vector<2x64xf32>, vector<2x32xf32>, vector<2x16xf32>, vector<2x1xf32>, vector<2x15xf32> -> vector<2x256xf32>
    %c0_20 = arith.constant 0 : index
    %c0_21 = arith.constant 0 : index
    %19 = vector.load %arg5[%c0_20, %c0_21] : memref<256x128xf32, #tpu.memory_space<vmem>>, vector<256x128xf32>
    %cst_22 = arith.constant dense<0.000000e+00> : vector<2x128xf32>
    %20 = tpu.matmul %18, %19, %cst_22 {dimension_numbers = #tpu.dot_dimension_numbers<[1], [0], [0], [1], [0, 0, 1, 1], [], []>} : vector<2x256xf32>, vector<256x128xf32>, vector<2x128xf32> -> vector<2x128xf32>
    %cst_23 = arith.constant 0.000000e+00 : f32
    %21 = vector.broadcast %cst_23 : f32 to vector<2x128xf32>
    %22 = arith.maximumf %20, %21 : vector<2x128xf32>
    %c248 = arith.constant 248 : index
    %c0_24 = arith.constant 0 : index
    %23 = vector.load %arg5[%c248, %c0_24] : memref<256x128xf32, #tpu.memory_space<vmem>>, vector<1x128xf32>
    %c249 = arith.constant 249 : index
    %c0_25 = arith.constant 0 : index
    %24 = vector.load %arg5[%c249, %c0_25] : memref<256x128xf32, #tpu.memory_space<vmem>>, vector<1x1xf32>
    %25 = vector.broadcast %23 : vector<1x128xf32> to vector<2x128xf32>
    %26 = arith.mulf %22, %25 : vector<2x128xf32>
    %cst_26 = arith.constant dense<0.000000e+00> : vector<2xf32>
    %27 = vector.multi_reduction <add>, %26, %cst_26 [1] : vector<2x128xf32> to vector<2xf32>
    %28 = vector.shape_cast %27 : vector<2xf32> to vector<2x1xf32>
    %29 = vector.broadcast %24 : vector<1x1xf32> to vector<2x1xf32>
    %30 = arith.addf %28, %29 : vector<2x1xf32>
    %c0_27 = arith.constant 0 : index
    %c0_28 = arith.constant 0 : index
    %31 = vector.load %arg6[%c0_27, %c0_28] : memref<2x1xf32, #tpu.memory_space<vmem>>, vector<2x1xf32>
    tpu.vector_store %arg6[%c0_27, %c0_28], %30 {strides = array<i32>} : memref<2x1xf32, #tpu.memory_space<vmem>>, vector<2x1xf32>,
    return
  }
  func.func @transform_0(%arg0: i32) -> (i32, i32, i32) {
    %c0_i32 = arith.constant 0 : i32
    %c0_i32_0 = arith.constant 0 : i32
    %c0_i32_1 = arith.constant 0 : i32
    return %arg0, %c0_i32, %c0_i32_0 : i32, i32, i32
  }
  func.func @transform_1(%arg0: i32) -> (i32, i32, i32) {
    %c0_i32 = arith.constant 0 : i32
    %c0_i32_0 = arith.constant 0 : i32
    %c0_i32_1 = arith.constant 0 : i32
    return %arg0, %c0_i32, %c0_i32_0 : i32, i32, i32
  }
  func.func @transform_2(%arg0: i32) -> (i32, i32, i32) {
    %c0_i32 = arith.constant 0 : i32
    %c0_i32_0 = arith.constant 0 : i32
    %c0_i32_1 = arith.constant 0 : i32
    return %arg0, %c0_i32, %c0_i32_0 : i32, i32, i32
  }
  func.func @transform_3(%arg0: i32) -> (i32, i32, i32) {
    %c0_i32 = arith.constant 0 : i32
    %c0_i32_0 = arith.constant 0 : i32
    %c0_i32_1 = arith.constant 0 : i32
    return %arg0, %c0_i32, %c0_i32_0 : i32, i32, i32
  }
  func.func @transform_4(%arg0: i32) -> (i32, i32) {
    %c0_i32 = arith.constant 0 : i32
    %c0_i32_0 = arith.constant 0 : i32
    %c0_i32_1 = arith.constant 0 : i32
    return %c0_i32, %c0_i32_0 : i32, i32
  }
  func.func @transform_5(%arg0: i32) -> (i32, i32) {
    %c0_i32 = arith.constant 0 : i32
    %c0_i32_0 = arith.constant 0 : i32
    return %arg0, %c0_i32 : i32, i32
  }
}

</mosaic_0001>

<llo_original>
// kernel: lossnet_forward.1
$region0: #{lossnet_forward.1}
  #allocation0 [shape = 'u32[]', space=smem, size = 0x4, offset = 0x4, fixed_abs, tag = 'smem constant byte address 0x4 - core index']
  #allocation1 [shape = 'u32[144,128]{1,0:T(1,128)}', space=vmem, size = 0x12000, scoped, tag = 'internal scratch']
  %s0 = inlined_call_operand.vmem [shape: f32[2,16,256], index: 0, kind: input, shape index: {}]
  %s1 = inlined_call_operand.vmem [shape: f32[2,32,64], index: 1, kind: input, shape index: {}]
  %s2 = inlined_call_operand.vmem [shape: f32[2,16,64], index: 2, kind: input, shape index: {}]
  %s3 = inlined_call_operand.vmem [shape: f32[2,4,128], index: 3, kind: input, shape index: {}]
  %s4 = inlined_call_operand.vmem [shape: f32[256,128], index: 4, kind: input, shape index: {}]
  %s5 = inlined_call_operand.vmem [shape: f32[2,1], index: 5, kind: output, shape index: {}]
  %s6 = sld [smem:[#allocation0]]
  $region30: #{lossnet_forward.1} parent=0
    _
  %s8 = ssub.s32 1, %s6
  %s9 = scalar_select 0, %s8, %s6
  // Predicated region
  $region2: #{lossnet_forward.1} parent=0 // pred_check
    _
  $region3: #{lossnet_forward.1} parent=0 // pred_check_branch
    %11 = sbr.rel (0) target = $region5
  $region4: #{lossnet_forward.1} parent=0 // pred_region
    _
  $region5: #{lossnet_forward.1} parent=0 // pred_fallthru
    _
  // Predicated region
  $region6: #{lossnet_forward.1} parent=0 // pred_check
    _
  $region7: #{lossnet_forward.1} parent=0 // pred_check_branch
    %13 = sbr.rel (0) target = $region9
  $region8: #{lossnet_forward.1} parent=0 // pred_region
    _
  $region9: #{lossnet_forward.1} parent=0 // pred_fallthru
    _
  // Predicated region
  $region10: #{lossnet_forward.1} parent=0 // pred_check
    _
  $region11: #{lossnet_forward.1} parent=0 // pred_check_branch
    %15 = sbr.rel (0) target = $region13
  $region12: #{lossnet_forward.1} parent=0 // pred_region
    _
  $region13: #{lossnet_forward.1} parent=0 // pred_fallthru
    _
  // Predicated region
  $region14: #{lossnet_forward.1} parent=0 // pred_check
    _
  $region15: #{lossnet_forward.1} parent=0 // pred_check_branch
    %17 = sbr.rel (0) target = $region17
  $region16: #{lossnet_forward.1} parent=0 // pred_region
    _
  $region17: #{lossnet_forward.1} parent=0 // pred_fallthru
    _
  // Predicated region
  $region18: #{lossnet_forward.1} parent=0 // pred_check
    _
  $region19: #{lossnet_forward.1} parent=0 // pred_check_branch
    %19 = sbr.rel (0) target = $region21
  $region20: #{lossnet_forward.1} parent=0 // pred_region
    _
  $region21: #{lossnet_forward.1} parent=0 // pred_fallthru
    _
  %v20 = vld [vmem:[%s0] sm:$0xff]
  %v21 = vld [vmem:[%s0 + $0x8] sm:$0xff]
  %v22 = vld [vmem:[%s0 + $0x10] sm:$0xff]
  %v23 = vld [vmem:[%s0 + $0x18] sm:$0xff]
  %v24 = vld [vmem:[%s0 + $0x20] sm:$0xff]
  %v25 = vld [vmem:[%s0 + $0x28] sm:$0xff]
  %v26 = vld [vmem:[%s0 + $0x30] sm:$0xff]
  %v27 = vld [vmem:[%s0 + $0x38] sm:$0xff]
  %v28 = vadd.f32 %v20, %v21
  %29 = vadd.xlane.f32.xlu0 %v28
  %v30 = vpop.xlane.xlu0 %29
  %v31 = vadd.f32 %v22, %v23
  %32 = vadd.xlane.f32.xlu0 %v31
  %v33 = vpop.xlane.xlu0 %32
  %v34 = vadd.f32 %v24, %v25
  %35 = vadd.xlane.f32.xlu0 %v34
  %v36 = vpop.xlane.xlu0 %35
  %v37 = vadd.f32 %v26, %v27
  %38 = vadd.xlane.f32.xlu0 %v37
  %v39 = vpop.xlane.xlu0 %38
  %v40 = vrcp.pop 256.0
  %v41 = vmul.f32 %v30, %v40
  %v42 = vmul.f32 %v33, %v40
  %v43 = vmul.f32 %v36, %v40
  %v44 = vmul.f32 %v39, %v40
  %v45 = vld [vmem:[%s1] sm:$0xff]
  %v46 = vld [vmem:[%s1 + $0x8] sm:$0xff]
  %v47 = vld [vmem:[%s1 + $0x10] sm:$0xff]
  %v48 = vld [vmem:[%s1 + $0x18] sm:$0xff]
  %v49 = vld [vmem:[%s1 + $0x20] sm:$0xff]
  %v50 = vld [vmem:[%s1 + $0x28] sm:$0xff]
  %v51 = vld [vmem:[%s1 + $0x30] sm:$0xff]
  %v52 = vld [vmem:[%s1 + $0x38] sm:$0xff]
  %vm53 = vcmask 523264
  %v54 = vsel %vm53, %v45, 0.0
  %55 = vadd.xlane.f32.xlu0 %v54
  %v56 = vpop.xlane.xlu0 %55
  %v57 = vsel %vm53, %v46, 0.0
  %58 = vadd.xlane.f32.xlu0 %v57
  %v59 = vpop.xlane.xlu0 %58
  %v60 = vsel %vm53, %v47, 0.0
  %61 = vadd.xlane.f32.xlu0 %v60
  %v62 = vpop.xlane.xlu0 %61
  %v63 = vsel %vm53, %v48, 0.0
  %64 = vadd.xlane.f32.xlu0 %v63
  %v65 = vpop.xlane.xlu0 %64
  %v66 = vsel %vm53, %v49, 0.0
  %67 = vadd.xlane.f32.xlu0 %v66
  %v68 = vpop.xlane.xlu0 %67
  %v69 = vsel %vm53, %v50, 0.0
  %70 = vadd.xlane.f32.xlu0 %v69
  %v71 = vpop.xlane.xlu0 %70
  %v72 = vsel %vm53, %v51, 0.0
  %73 = vadd.xlane.f32.xlu0 %v72
  %v74 = vpop.xlane.xlu0 %73
  %v75 = vsel %vm53, %v52, 0.0
  %76 = vadd.xlane.f32.xlu0 %v75
  %v77 = vpop.xlane.xlu0 %76
  %v78 = vrcp.pop 64.0
  %v79 = vmul.f32 %v56, %v78
  %v80 = vmul.f32 %v59, %v78
  %v81 = vmul.f32 %v62, %v78
  %v82 = vmul.f32 %v65, %v78
  %v83 = vmul.f32 %v68, %v78
  %v84 = vmul.f32 %v71, %v78
  %v85 = vmul.f32 %v74, %v78
  %v86 = vmul.f32 %v77, %v78
  %v87 = vld [vmem:[%s2] sm:$0xff]
  %v88 = vld [vmem:[%s2 + $0x8] sm:$0xff]
  %v89 = vld [vmem:[%s2 + $0x10] sm:$0xff]
  %v90 = vld [vmem:[%s2 + $0x18] sm:$0xff]
  %v91 = vsel %vm53, %v87, 0.0
  %v92 = vsel %vm53, %v88, 0.0
  %v93 = vadd.f32 %v91, %v92
  %v94 = vrot.slane %v93, 4
  %v95 = vadd.f32 %v93, %v94
  %v96 = vrot.slane %v95, 2
  %v97 = vadd.f32 %v95, %v96
  %v98 = vrot.slane %v97, 1
  %v99 = vadd.f32 %v97, %v98
  %v100 = vsel %vm53, %v89, 0.0
  %v101 = vsel %vm53, %v90, 0.0
  %v102 = vadd.f32 %v100, %v101
  %v103 = vrot.slane %v102, 4
  %v104 = vadd.f32 %v102, %v103
  %v105 = vrot.slane %v104, 2
  %v106 = vadd.f32 %v104, %v105
  %v107 = vrot.slane %v106, 1
  %v108 = vadd.f32 %v106, %v107
  %v109 = vrcp.pop 16.0
  %v110 = vmul.f32 %v99, %v109
  %v111 = vmul.f32 %v108, %v109
  %v112 = vld [vmem:[%s3] sm:$0xf]
  %v113 = vld [vmem:[%s3 + $0x4] sm:$0xf]
  %vm114 = vcmask 1043456
  %v115 = vsel %vm114, %v112, 0.0
  %v116 = vrot.slane %v115, 4
  %v117 = vadd.f32 %v115, %v116
  %v118 = vrot.slane %v117, 2
  %v119 = vadd.f32 %v117, %v118
  %v120 = vrot.slane %v119, 1
  %v121 = vadd.f32 %v119, %v120
  %v122 = vsel %vm114, %v113, 0.0
  %v123 = vrot.slane %v122, 4
  %v124 = vadd.f32 %v122, %v123
  %v125 = vrot.slane %v124, 2
  %v126 = vadd.f32 %v124, %v125
  %v127 = vrot.slane %v126, 1
  %v128 = vadd.f32 %v126, %v127
  %v129 = vrcp.pop 4.0
  %v130 = vmul.f32 %v121, %v129
  %v131 = vmul.f32 %v128, %v129
  %vm134 = vcmask 1041409
  %v135 = vsel %vm134, %v131, %v130
  %v139 = vsel %vm134, %v111, %v110
  %v149 = vlaneseq
  %v150 = vand.u32 %v149, 127
  %v151 = vadd.s32 %v150, 4294967232
  %v152 = vlaneseq
  %v153 = vshrl.u32 %v152, 7
  %v154 = vsub.s32 %v151, %v153
  %v155 = vrot.slane %v79, %v154
  %v156 = vadd.s32 %v150, 4294967224
  %v157 = vlaneseq
  %v158 = vshrl.u32 %v157, 7
  %v159 = vsub.s32 %v156, %v158
  %v160 = vrot.slane %v80, %v159
  %vm161 = vcmask 654912
  %v162 = vsel %vm161, %v160, %v155
  %v163 = vadd.s32 %v150, 4294967216
  %v164 = vlaneseq
  %v165 = vshrl.u32 %v164, 7
  %v166 = vsub.s32 %v163, %v165
  %v167 = vrot.slane %v81, %v166
  %vm168 = vcmask 720512
  %v169 = vsel %vm168, %v167, %v162
  %v170 = vadd.s32 %v150, 4294967208
  %v171 = vlaneseq
  %v172 = vshrl.u32 %v171, 7
  %v173 = vsub.s32 %v170, %v172
  %v174 = vrot.slane %v82, %v173
  %vm175 = vcmask 786112
  %v176 = vsel %vm175, %v174, %v169
  %v177 = vlaneseq
  %v178 = vshrl.u32 %v177, 7
  %v179 = vsub.s32 %v151, %v178
  %v180 = vrot.slane %v83, %v179
  %v181 = vlaneseq
  %v182 = vshrl.u32 %v181, 7
  %v183 = vsub.s32 %v156, %v182
  %v184 = vrot.slane %v84, %v183
  %v185 = vsel %vm161, %v184, %v180
  %v186 = vlaneseq
  %v187 = vshrl.u32 %v186, 7
  %v188 = vsub.s32 %v163, %v187
  %v189 = vrot.slane %v85, %v188
  %v190 = vsel %vm168, %v189, %v185
  %v191 = vlaneseq
  %v192 = vshrl.u32 %v191, 7
  %v193 = vsub.s32 %v170, %v192
  %v194 = vrot.slane %v86, %v193
  %v195 = vsel %vm175, %v194, %v190
  %v196 = vsel %vm134, %v195, %v176
  %v202 = vadd.s32 %v150, 4294967200
  %v203 = vlaneseq
  %v204 = vshrl.u32 %v203, 7
  %v205 = vsub.s32 %v202, %v204
  %v206 = vrot.slane %v41, %v205
  %v207 = vadd.s32 %v150, 4294967192
  %v208 = vlaneseq
  %v209 = vshrl.u32 %v208, 7
  %v210 = vsub.s32 %v207, %v209
  %v211 = vrot.slane %v42, %v210
  %vm212 = vcmask 917312
  %v213 = vsel %vm212, %v211, %v206
  %v214 = vlaneseq
  %v215 = vshrl.u32 %v214, 7
  %v216 = vsub.s32 %v202, %v215
  %v217 = vrot.slane %v43, %v216
  %v218 = vlaneseq
  %v219 = vshrl.u32 %v218, 7
  %v220 = vsub.s32 %v207, %v219
  %v221 = vrot.slane %v44, %v220
  %v222 = vsel %vm212, %v221, %v217
  %v223 = vsel %vm134, %v222, %v213
  %v225 = vsel %vm53, %v139, %v196
  %vm226 = vcmask 785408
  %v227 = vsel %vm226, %v225, %v223
  %vm228 = vcmask 916480
  %v229 = vsel %vm228, %v227, 1.0
  %vm230 = vcmask 924672
  %v231 = vsel %vm230, %v229, 0.0
  %v232 = vld [vmem:[%s4] sm:$0xff]
  %v233 = vld [vmem:[%s4 + $0x8] sm:$0xff]
  %v234 = vld [vmem:[%s4 + $0x10] sm:$0xff]
  %v235 = vld [vmem:[%s4 + $0x18] sm:$0xff]
  %v236 = vld [vmem:[%s4 + $0x20] sm:$0xff]
  %v237 = vld [vmem:[%s4 + $0x28] sm:$0xff]
  %v238 = vld [vmem:[%s4 + $0x30] sm:$0xff]
  %v239 = vld [vmem:[%s4 + $0x38] sm:$0xff]
  %v240 = vld [vmem:[%s4 + $0x40] sm:$0xff]
  %v241 = vld [vmem:[%s4 + $0x48] sm:$0xff]
  %v242 = vld [vmem:[%s4 + $0x50] sm:$0xff]
  %v243 = vld [vmem:[%s4 + $0x58] sm:$0xff]
  %v244 = vld [vmem:[%s4 + $0x60] sm:$0xff]
  %v245 = vld [vmem:[%s4 + $0x68] sm:$0xff]
  %v246 = vld [vmem:[%s4 + $0x70] sm:$0xff]
  %v247 = vld [vmem:[%s4 + $0x78] sm:$0xff]
  %v248 = vld [vmem:[%s4 + $0x80] sm:$0xff]
  %v249 = vld [vmem:[%s4 + $0x88] sm:$0xff]
  %v250 = vld [vmem:[%s4 + $0x90] sm:$0xff]
  %v251 = vld [vmem:[%s4 + $0x98] sm:$0xff]
  %v252 = vld [vmem:[%s4 + $0xa0] sm:$0xff]
  %v253 = vld [vmem:[%s4 + $0xa8] sm:$0xff]
  %v254 = vld [vmem:[%s4 + $0xb0] sm:$0xff]
  %v255 = vld [vmem:[%s4 + $0xb8] sm:$0xff]
  %v256 = vld [vmem:[%s4 + $0xc0] sm:$0xff]
  %v257 = vld [vmem:[%s4 + $0xc8] sm:$0xff]
  %v258 = vld [vmem:[%s4 + $0xd0] sm:$0xff]
  %v259 = vld [vmem:[%s4 + $0xd8] sm:$0xff]
  %v260 = vld [vmem:[%s4 + $0xe0] sm:$0xff]
  %v261 = vld [vmem:[%s4 + $0xe8] sm:$0xff]
  %v262 = vld [vmem:[%s4 + $0xf0] sm:$0xff]
  %v263 = vld [vmem:[%s4 + $0xf8] sm:$0xff]
  %264 = vmatprep.subr.mxu0 0.0
  %265 = vmatpush1.msra.mxu0 %v247
  %266 = vmatprep.subr.mxu0 0.0
  %267 = vmatpush1.msra.mxu0 %v246
  %268 = vmatprep.subr.mxu0 0.0
  %269 = vmatpush1.msra.mxu0 %v245
  %270 = vmatprep.subr.mxu0 0.0
  %271 = vmatpush1.msra.mxu0 %v244
  %272 = vmatprep.subr.mxu0 0.0
  %273 = vmatpush1.msra.mxu0 %v243
  %274 = vmatprep.subr.mxu0 0.0
  %275 = vmatpush1.msra.mxu0 %v242
  %276 = vmatprep.subr.mxu0 0.0
  %277 = vmatpush1.msra.mxu0 %v241
  %278 = vmatprep.subr.mxu0 0.0
  %279 = vmatpush1.msra.mxu0 %v240
  %280 = vmatprep.subr.mxu0 0.0
  %281 = vmatpush1.msra.mxu0 %v239
  %282 = vmatprep.subr.mxu0 0.0
  %283 = vmatpush1.msra.mxu0 %v238
  %284 = vmatprep.subr.mxu0 0.0
  %285 = vmatpush1.msra.mxu0 %v237
  %286 = vmatprep.subr.mxu0 0.0
  %287 = vmatpush1.msra.mxu0 %v236
  %288 = vmatprep.subr.mxu0 0.0
  %289 = vmatpush1.msra.mxu0 %v235
  %290 = vmatprep.subr.mxu0 0.0
  %291 = vmatpush1.msra.mxu0 %v234
  %292 = vmatprep.subr.mxu0 0.0
  %293 = vmatpush1.msra.mxu0 %v233
  %294 = vmatprep.subr.mxu0 0.0
  %295 = vmatpush1.msra.mxu0 %v232
  %296 = vmatprep.subr.mxu0 0.0
  %297 = vmatpush2.msra.mxu0 %v263
  %298 = vmatprep.subr.mxu0 0.0
  %299 = vmatpush2.msra.mxu0 %v262
  %300 = vmatprep.subr.mxu0 0.0
  %301 = vmatpush2.msra.mxu0 %v261
  %302 = vmatprep.subr.mxu0 0.0
  %303 = vmatpush2.msra.mxu0 %v260
  %304 = vmatprep.subr.mxu0 0.0
  %305 = vmatpush2.msra.mxu0 %v259
  %306 = vmatprep.subr.mxu0 0.0
  %307 = vmatpush2.msra.mxu0 %v258
  %308 = vmatprep.subr.mxu0 0.0
  %309 = vmatpush2.msra.mxu0 %v257
  %310 = vmatprep.subr.mxu0 0.0
  %311 = vmatpush2.msra.mxu0 %v256
  %312 = vmatprep.subr.mxu0 0.0
  %313 = vmatpush2.msra.mxu0 %v255
  %314 = vmatprep.subr.mxu0 0.0
  %315 = vmatpush2.msra.mxu0 %v254
  %316 = vmatprep.subr.mxu0 0.0
  %317 = vmatpush2.msra.mxu0 %v253
  %318 = vmatprep.subr.mxu0 0.0
  %319 = vmatpush2.msra.mxu0 %v252
  %320 = vmatprep.subr.mxu0 0.0
  %321 = vmatpush2.msra.mxu0 %v251
  %322 = vmatprep.subr.mxu0 0.0
  %323 = vmatpush2.msra.mxu0 %v250
  %324 = vmatprep.subr.mxu0 0.0
  %325 = vmatpush2.msra.mxu0 %v249
  %326 = vmatprep.subr.mxu0 0.0
  %327 = vmatpush2.msra.mxu0 %v248
  %328 = vmatprep.mubr.f32.mxu0 %v231
  %329 = vmatmul.mubr.f32.gmra.mxu0 %v135
  %v330 = vpop.f32.mrf.mxu0
  %v331 = vadd.f32 0.0, %v330
  %v332 = vpop.f32.mrf.mxu0
  %333 = vdwg.mxu0
  %v334 = vmax.f32 %v331, 0.0
  %v335 = vld [vmem:[%s4 + $0xf8] sm:$0x1]
  %v336 = vld [vmem:[%s4 + $0xf9] sm:$0x1]
  %v337 = vlaneseq
  %v338 = vshrl.u32 %v337, 7
  %v339 = vsub.s32 0, %v338
  %v340 = vrot.slane %v335, %v339
  %v341 = vmul.f32 %v334, %v340
  %vm342 = vcmask 1041408
  %v343 = vsel %vm342, %v341, 0.0
  %344 = vadd.xlane.f32.xlu0 %v343
  %v345 = vpop.xlane.xlu0 %344
  %v346 = vlaneseq
  %v347 = vshrl.u32 %v346, 7
  %v348 = vsub.s32 0, %v347
  %v349 = vrot.slane %v336, %v348
  %v350 = vadd.f32 %v345, %v349
  %vm351 = vcmask 1024
  %352 = vst.msk [vmem:[%s5] sm:$0x3] %vm351, %v350
  // Predicated region
  $region22: #{lossnet_forward.1} parent=0 // pred_check
    _
  $region23: #{lossnet_forward.1} parent=0 // pred_check_branch
    %354 = sbr.rel (0) target = $region25
  $region24: #{lossnet_forward.1} parent=0 // pred_region
    _
  $region25: #{lossnet_forward.1} parent=0 // pred_fallthru
    _
  // Predicated region
  $region26: #{lossnet_forward.1} parent=0 // pred_check
    _
  $region27: #{lossnet_forward.1} parent=0 // pred_check_branch
    %356 = sbr.rel (0) target = $region29
  $region28: #{lossnet_forward.1} parent=0 // pred_region
    _
  $region29: #{lossnet_forward.1} parent=0 // pred_fallthru
    _

</llo_original>
